<compile_context>
chip_gen: v5e
topology: v5e:2x2
jax: 0.10.0
libtpu: 0.0.40
codegen_flags: <defaults>
</compile_context>

<pallas_src>
import math

import jax
import jax.numpy as jnp
from jax import lax
from jax.experimental import pallas as pl
from jax.experimental.pallas import tpu as pltpu


# ---------------------------------------------------------------------------
# Box-Muller helpers.
# ---------------------------------------------------------------------------
def _bits_to_unit_open(bits_u32, bitcast_f32):
    """uint32 random bits -> float32 uniform in (0, 1] with one subtract."""
    # Put the top 23 random bits into the mantissa of a float in [1, 2);
    # 2.0 - [1, 2) == (0, 1], folding the "1 - u" flip into a single VPU op.
    mant = (bits_u32 >> jnp.uint32(9)) | jnp.uint32(0x3F800000)
    return jnp.float32(2.0) - bitcast_f32(mant)


def _box_muller_radius_angle(bits1, bits2, bitcast_f32):
    """Two uint32 bit streams -> (radius, angle) of the Box-Muller transform."""
    u1 = _bits_to_unit_open(bits1, bitcast_f32)
    u2 = _bits_to_unit_open(bits2, bitcast_f32)
    r = jnp.sqrt(jnp.float32(-2.0) * jnp.log(u1))
    theta = jnp.float32(2.0 * math.pi) * u2
    return r, theta


# ---------------------------------------------------------------------------
# Kernels.
# ---------------------------------------------------------------------------
def _gauss_kernel_tpu(seed_ref, mean_ref, out_ref, *, std, use_pairs):
    i = pl.program_id(0)
    j = pl.program_id(1)
    # Per-tile seed words: independent streams for every tile / TensorCore,
    # mixed by the PRNG itself rather than by sequential-integer addition.
    pltpu.prng_seed(seed_ref[0], i, j)

    tm, tn = out_ref.shape
    std_f = jnp.float32(std)
    bitcast = lambda m: pltpu.bitcast(m, jnp.float32)

    if use_pairs:
        # Draw bits for only half the lanes and use BOTH Box-Muller outputs:
        # halves the PRNG draws and keeps EUP work at 2 transcendentals/elem.
        half = tn // 2
        bits1 = pltpu.bitcast(pltpu.prng_random_bits((tm, half)), jnp.uint32)
        bits2 = pltpu.bitcast(pltpu.prng_random_bits((tm, half)), jnp.uint32)
        r, theta = _box_muller_radius_angle(bits1, bits2, bitcast)
        # Two direct, lane-aligned (half % 128 == 0) half-stores instead of a
        # jnp.concatenate: no extra (TM, TN) temporary, the first half's store
        # can issue while the second half is still being computed.
        mean_lo = mean_ref[:, :half].astype(jnp.float32)
        out_ref[:, :half] = (r * jnp.cos(theta) * std_f + mean_lo).astype(out_ref.dtype)
        mean_hi = mean_ref[:, half:].astype(jnp.float32)
        out_ref[:, half:] = (r * jnp.sin(theta) * std_f + mean_hi).astype(out_ref.dtype)
    else:
        # Lane tile not 256-aligned: one normal per element, cos branch only
        # (the sin branch is never emitted, so no wasted EUP/PRNG work).
        bits1 = pltpu.bitcast(pltpu.prng_random_bits((tm, tn)), jnp.uint32)
        bits2 = pltpu.bitcast(pltpu.prng_random_bits((tm, tn)), jnp.uint32)
        r, theta = _box_muller_radius_angle(bits1, bits2, bitcast)
        mean = mean_ref[...].astype(jnp.float32)
        out_ref[...] = (r * jnp.cos(theta) * std_f + mean).astype(out_ref.dtype)


def _gauss_kernel_fallback(mean_ref, bits1_ref, bits2_ref, out_ref, *, std):
    # Portable path (no TPU-only primitives): bits are regular tiled inputs.
    bitcast = lambda m: lax.bitcast_convert_type(m, jnp.float32)
    r, theta = _box_muller_radius_angle(bits1_ref[...], bits2_ref[...], bitcast)
    mean = mean_ref[...].astype(jnp.float32)
    out_ref[...] = (r * jnp.cos(theta) * jnp.float32(std) + mean).astype(out_ref.dtype)


# ---------------------------------------------------------------------------
# Tile selection & wrapper.
# ---------------------------------------------------------------------------
_MAX_TM = 512      # sublanes per tile (multiple of 8)
_MAX_TN = 2048     # lanes per tile (multiple of 256 -> pairs path, lane-dense)
# 2 arrays x 2 pipeline buffers x 4 MiB f32 tile = 16 MiB, plus internal
# scratch; 32 MiB satisfies v5e's 16 MiB scoped default (raised explicitly)
# and leaves half of v7x's 64 MiB physical VMEM as headroom.
_VMEM_LIMIT_BYTES = 32 * 1024 * 1024


def _select_tiles(M, N):
    """Fixed (TM, TN) tiles; ragged tails are masked by the Pallas pipeline.

    A full-extent block is used only when the dim already fits inside one max
    tile (full-extent blocks are always layout-legal), so awkward shapes never
    blow up into a single giant block that overflows VMEM.
    """
    TM = M if M <= _MAX_TM else _MAX_TM
    TN = N if N <= _MAX_TN else _MAX_TN

    # v7x has 2 TensorCores: make sure the "parallel" grid has >= 2 points
    # when the whole array would otherwise be a single tile.
    if pl.cdiv(M, TM) == 1 and pl.cdiv(N, TN) == 1:
        if N >= 512 and N % 512 == 0:
            TN = N // 2          # stays a multiple of 256 (pairs + lane-aligned)
        elif M >= 16 and M % 16 == 0:
            TM = M // 2          # stays a multiple of 8
    return TM, TN


def gaussian_distributor_forward(mean_nchw, std, seed=0, donate_mean=False):
    """ret = randn_like(mean) * std + mean, computed in a Pallas kernel."""
    B, C, H, W = mean_nchw.shape
    M, N = B * C, H * W
    mean2d = mean_nchw.reshape(M, N)

    TM, TN = _select_tiles(M, N)
    grid = (pl.cdiv(M, TM), pl.cdiv(N, TN))
    n_elem = M * N

    if jax.default_backend() == "tpu":
        use_pairs = (TN % 256) == 0
        kernel = lambda s, m, o: _gauss_kernel_tpu(
            s, m, o, std=float(std), use_pairs=use_pairs)
        cost = pl.CostEstimate(
            flops=10 * n_elem,
            transcendentals=(2 if use_pairs else 3) * n_elem,
            bytes_accessed=2 * n_elem * mean2d.dtype.itemsize,
        )
        out2d = pl.pallas_call(
            kernel,
            out_shape=jax.ShapeDtypeStruct(mean2d.shape, mean2d.dtype),
            grid_spec=pltpu.PrefetchScalarGridSpec(
                num_scalar_prefetch=1,
                grid=grid,
                in_specs=[pl.BlockSpec((TM, TN), lambda i, j, seed_ref: (i, j))],
                out_specs=pl.BlockSpec((TM, TN), lambda i, j, seed_ref: (i, j)),
            ),
            compiler_params=pltpu.CompilerParams(
                dimension_semantics=("parallel", "parallel"),
                vmem_limit_bytes=_VMEM_LIMIT_BYTES,
            ),
            cost_estimate=cost,
            # Optional in-place update when the caller no longer needs the
            # mean buffer (input 1 = mean, after the scalar-prefetch arg):
            # halves HBM footprint for big feature maps, off by default.
            input_output_aliases=({1: 0} if donate_mean else {}),
        )(jnp.array([seed], dtype=jnp.int32), mean2d)
    else:
        # Non-TPU / interpret fallback: TPU hardware-PRNG primitives have no
        # CPU lowering, so draw the uniform bits with jax.random outside and
        # keep Box-Muller + scale-shift inside the kernel.
        k1, k2 = jax.random.split(jax.random.PRNGKey(seed))
        bits1 = jax.random.bits(k1, (M, N), dtype=jnp.uint32)
        bits2 = jax.random.bits(k2, (M, N), dtype=jnp.uint32)
        kernel = lambda m, b1, b2, o: _gauss_kernel_fallback(
            m, b1, b2, o, std=float(std))
        spec = pl.BlockSpec((TM, TN), lambda i, j: (i, j))
        out2d = pl.pallas_call(
            kernel,
            out_shape=jax.ShapeDtypeStruct(mean2d.shape, mean2d.dtype),
            grid=grid,
            in_specs=[spec, spec, spec],
            out_specs=spec,
        )(mean2d, bits1, bits2)

    return out2d.reshape(B, C, H, W)


class GaussianDistributor:
    """JAX/Pallas port of doccer.model.distr.GaussianDistributor."""

    def __init__(self, std):
        self.std = float(std)

    def get_mean(self, x):
        # TODO(synk): get_mean is abstract (NotImplementedError) in the
        # reference module; the identity mean stands in for a concrete subclass.
        return x

    def forward(self, x, seed=0):
        mean = self.get_mean(x)
        return gaussian_distributor_forward(mean, self.std, seed=seed)


if __name__ == "__main__":
    key = jax.random.PRNGKey(0)
    B, C, H, W = 2, 4, 16, 16
    x = jax.random.normal(key, (B, C, H, W), dtype=jnp.float32)

    distributor = GaussianDistributor(std=0.5)
    out = distributor.forward(x, seed=1234)
    out = jax.block_until_ready(out)

    assert out.shape == (B, C, H, W)
    assert out.dtype == jnp.float32
    # Sanity check: noise was added (output differs from the mean) but stays
    # statistically close to it (std = 0.5 -> E|diff| ~ 0.4).
    diff = out - x
    assert bool(jnp.all(jnp.isfinite(out)))
    mean_abs = float(jnp.abs(diff).mean())
    assert 0.0 < mean_abs < 5.0 * 0.5

    print("KERNEL_OK")
</pallas_src>

<mosaic_0001>
module attributes {stable_mosaic.version = 11 : i64} {
  func.func @_lambda_(%arg0: i32, %arg1: i32, %arg2: memref<8x256xf32, #tpu.memory_space<vmem>>, %arg3: memref<8x256xi32, #tpu.memory_space<vmem>>, %arg4: memref<8x256xi32, #tpu.memory_space<vmem>>, %arg5: memref<8x256xf32, #tpu.memory_space<vmem>>) attributes {dimension_semantics = [#tpu.dimension_semantics<arbitrary>, #tpu.dimension_semantics<arbitrary>], iteration_bounds = array<i64: 1, 1>, scalar_prefetch = 0 : i64, scratch_operands = 0 : i64, tpu.core_type = #tpu.core_type<tc>, window_params = [{transform_indices = @transform_0, window_bounds = array<i64: 8, 256>}, {transform_indices = @transform_1, window_bounds = array<i64: 8, 256>}, {transform_indices = @transform_2, window_bounds = array<i64: 8, 256>}, {transform_indices = @transform_3, window_bounds = array<i64: 8, 256>}]} {
    %c0 = arith.constant 0 : index
    %c0_0 = arith.constant 0 : index
    %0 = vector.load %arg3[%c0, %c0_0] : memref<8x256xi32, #tpu.memory_space<vmem>>, vector<8x256xi32>
    %c0_1 = arith.constant 0 : index
    %c0_2 = arith.constant 0 : index
    %1 = vector.load %arg4[%c0_1, %c0_2] : memref<8x256xi32, #tpu.memory_space<vmem>>, vector<8x256xi32>
    %c9_i32 = arith.constant 9 : i32
    %2 = vector.broadcast %c9_i32 : i32 to vector<8x256xi32>
    %3 = arith.shrui %0, %2 : vector<8x256xi32>
    %c1065353216_i32 = arith.constant 1065353216 : i32
    %4 = vector.broadcast %c1065353216_i32 : i32 to vector<8x256xi32>
    %5 = arith.ori %3, %4 : vector<8x256xi32>
    %6 = tpu.bitcast %5 : vector<8x256xi32> -> vector<8x256xf32>
    %cst = arith.constant 2.000000e+00 : f32
    %7 = vector.broadcast %cst : f32 to vector<8x256xf32>
    %8 = arith.subf %7, %6 : vector<8x256xf32>
    %c9_i32_3 = arith.constant 9 : i32
    %9 = vector.broadcast %c9_i32_3 : i32 to vector<8x256xi32>
    %10 = arith.shrui %1, %9 : vector<8x256xi32>
    %c1065353216_i32_4 = arith.constant 1065353216 : i32
    %11 = vector.broadcast %c1065353216_i32_4 : i32 to vector<8x256xi32>
    %12 = arith.ori %10, %11 : vector<8x256xi32>
    %13 = tpu.bitcast %12 : vector<8x256xi32> -> vector<8x256xf32>
    %cst_5 = arith.constant 2.000000e+00 : f32
    %14 = vector.broadcast %cst_5 : f32 to vector<8x256xf32>
    %15 = arith.subf %14, %13 : vector<8x256xf32>
    %16 = math.log %8 : vector<8x256xf32>
    %cst_6 = arith.constant -2.000000e+00 : f32
    %17 = vector.broadcast %cst_6 : f32 to vector<8x256xf32>
    %18 = arith.mulf %17, %16 : vector<8x256xf32>
    %19 = math.sqrt %18 : vector<8x256xf32>
    %cst_7 = arith.constant 6.28318548 : f32
    %20 = vector.broadcast %cst_7 : f32 to vector<8x256xf32>
    %21 = arith.mulf %20, %15 : vector<8x256xf32>
    %c0_8 = arith.constant 0 : index
    %c0_9 = arith.constant 0 : index
    %22 = vector.load %arg2[%c0_8, %c0_9] : memref<8x256xf32, #tpu.memory_space<vmem>>, vector<8x256xf32>
    %23 = math.cos %21 : vector<8x256xf32>
    %24 = arith.mulf %19, %23 : vector<8x256xf32>
    %cst_10 = arith.constant 5.000000e-01 : f32
    %25 = vector.broadcast %cst_10 : f32 to vector<8x256xf32>
    %26 = arith.mulf %24, %25 : vector<8x256xf32>
    %27 = arith.addf %26, %22 : vector<8x256xf32>
    %c0_11 = arith.constant 0 : index
    %c0_12 = arith.constant 0 : index
    %28 = vector.load %arg5[%c0_11, %c0_12] : memref<8x256xf32, #tpu.memory_space<vmem>>, vector<8x256xf32>
    tpu.vector_store %arg5[%c0_11, %c0_12], %27 {strides = array<i32>} : memref<8x256xf32, #tpu.memory_space<vmem>>, vector<8x256xf32>,
    return
  }
  func.func @transform_0(%arg0: i32, %arg1: i32) -> (i32, i32) {
    %c0_i32 = arith.constant 0 : i32
    return %arg0, %arg1 : i32, i32
  }
  func.func @transform_1(%arg0: i32, %arg1: i32) -> (i32, i32) {
    %c0_i32 = arith.constant 0 : i32
    return %arg0, %arg1 : i32, i32
  }
  func.func @transform_2(%arg0: i32, %arg1: i32) -> (i32, i32) {
    %c0_i32 = arith.constant 0 : i32
    return %arg0, %arg1 : i32, i32
  }
  func.func @transform_3(%arg0: i32, %arg1: i32) -> (i32, i32) {
    %c0_i32 = arith.constant 0 : i32
    return %arg0, %arg1 : i32, i32
  }
}

</mosaic_0001>

<llo_original>
// kernel: tpu_custom_call.1
$region0: #{tpu_custom_call.1}
  #allocation0 [shape = 'u32[]', space=smem, size = 0x4, offset = 0x4, fixed_abs, tag = 'smem constant byte address 0x4 - core index']
  #allocation1 [shape = 'u32[72,128]{1,0:T(1,128)}', space=vmem, size = 0x9000, scoped, tag = 'internal scratch']
  %s0 = inlined_call_operand.hbm [shape: f32[8,256], index: 0, kind: input, shape index: {}]
  %s1 = inlined_call_operand.hbm [shape: u32[8,256], index: 1, kind: input, shape index: {}]
  %s2 = inlined_call_operand.hbm [shape: u32[8,256], index: 2, kind: input, shape index: {}]
  %s3 = inlined_call_operand.hbm [shape: f32[8,256], index: 3, kind: output, shape index: {}]
  %s4 = sld [smem:[#allocation0]]
  $region34: #{tpu_custom_call.1} parent=0
    _
  %s6 = ssub.s32 1, %s4
  %s7 = scalar_select 0, %s6, %s4
  $region1: #{tpu_custom_call.1} parent=0
    #allocation2 [shape = 'u8[8192]{0}', space=vmem, size = 0x2000, scoped, tag = 'input window, operand 0, single buffered']
    #allocation3 [shape = 's32[1]{0}', space=sflag, size = 0x4, scoped, tag = 'scoped memory for tpu_custom_call.1']
    #allocation4 [shape = 's32[1]{0}', space=sflag, size = 0x4, scoped, tag = 'scoped memory for tpu_custom_call.1']
    #allocation5 [shape = 'u8[8192]{0}', space=vmem, size = 0x2000, scoped, tag = 'input window, operand 1, single buffered']
    #allocation6 [shape = 's32[1]{0}', space=sflag, size = 0x4, scoped, tag = 'scoped memory for tpu_custom_call.1']
    #allocation7 [shape = 'u8[8192]{0}', space=vmem, size = 0x2000, scoped, tag = 'input window, operand 2, single buffered']
    #allocation8 [shape = 'u8[8192]{0}', space=vmem, size = 0x2000, scoped, tag = 'output window, operand 0, single buffered']
    %8 = vsyncpa [#allocation3], 0
    %9 = vsyncpa [#allocation6], 0
    %10 = vsyncpa [#allocation4], 0
    // Predicated region
    $region2: #{tpu_custom_call.1} parent=1 // pred_check
      _
    $region3: #{tpu_custom_call.1} parent=1 // pred_check_branch
      %12 = sbr.rel (0) target = $region5
    $region4: #{tpu_custom_call.1} parent=1 // pred_region
      %14 = vsyncadd [#allocation3], 0
      %s16 = sshll.u32 %s0, 4
      %s17 = int_to_ptr.hbm [resolvable:$true] %s16
      %s18 = sshll.u32 [#allocation2], 4
      %s19 = int_to_ptr.vmem [resolvable:$true] %s18
      %21 = dma.hbm_to_vmem [thread:$0]  %s17, 256, %s19, [#allocation3]
    $region5: #{tpu_custom_call.1} parent=1 // pred_fallthru
      _
    // Predicated region
    $region6: #{tpu_custom_call.1} parent=1 // pred_check
      _
    $region7: #{tpu_custom_call.1} parent=1 // pred_check_branch
      %23 = sbr.rel (0) target = $region9
    $region8: #{tpu_custom_call.1} parent=1 // pred_region
      %25 = vsyncadd [#allocation6], 0
      %s27 = sshll.u32 %s1, 4
      %s28 = int_to_ptr.hbm [resolvable:$true] %s27
      %s29 = sshll.u32 [#allocation5], 4
      %s30 = int_to_ptr.vmem [resolvable:$true] %s29
      %32 = dma.hbm_to_vmem [thread:$0]  %s28, 256, %s30, [#allocation6]
    $region9: #{tpu_custom_call.1} parent=1 // pred_fallthru
      _
    // Predicated region
    $region10: #{tpu_custom_call.1} parent=1 // pred_check
      _
    $region11: #{tpu_custom_call.1} parent=1 // pred_check_branch
      %34 = sbr.rel (0) target = $region13
    $region12: #{tpu_custom_call.1} parent=1 // pred_region
      %36 = vsyncadd [#allocation6], 0
      %s38 = sshll.u32 %s2, 4
      %s39 = int_to_ptr.hbm [resolvable:$true] %s38
      %s40 = sshll.u32 [#allocation7], 4
      %s41 = int_to_ptr.vmem [resolvable:$true] %s40
      %43 = dma.hbm_to_vmem [thread:$0]  %s39, 256, %s41, [#allocation6]
    $region13: #{tpu_custom_call.1} parent=1 // pred_fallthru
      _
    // Predicated region
    $region14: #{tpu_custom_call.1} parent=1 // pred_check
      _
    $region15: #{tpu_custom_call.1} parent=1 // pred_check_branch
      %45 = sbr.rel (0) target = $region17
    $region16: #{tpu_custom_call.1} parent=1 // pred_region
      %47 = dma.done [#allocation3], 256
    $region17: #{tpu_custom_call.1} parent=1 // pred_fallthru
      _
    // Predicated region
    $region18: #{tpu_custom_call.1} parent=1 // pred_check
      _
    $region19: #{tpu_custom_call.1} parent=1 // pred_check_branch
      %49 = sbr.rel (0) target = $region21
    $region20: #{tpu_custom_call.1} parent=1 // pred_region
      %51 = dma.done [#allocation6], 256
    $region21: #{tpu_custom_call.1} parent=1 // pred_fallthru
      _
    // Predicated region
    $region22: #{tpu_custom_call.1} parent=1 // pred_check
      _
    $region23: #{tpu_custom_call.1} parent=1 // pred_check_branch
      %53 = sbr.rel (0) target = $region25
    $region24: #{tpu_custom_call.1} parent=1 // pred_region
      %55 = dma.done [#allocation6], 256
    $region25: #{tpu_custom_call.1} parent=1 // pred_fallthru
      _
    %v56 = vld [vmem:[#allocation5] sm:$0xff]
    %v57 = vld [vmem:[#allocation5 + $0x8] sm:$0xff]
    %v58 = vld [vmem:[#allocation7] sm:$0xff]
    %v59 = vld [vmem:[#allocation7 + $0x8] sm:$0xff]
    %v60 = vshrl.u32 %v56, 9
    %v61 = vshrl.u32 %v57, 9
    %v62 = vor.u32 %v60, 1065353216
    %v63 = vor.u32 %v61, 1065353216
    %v66 = vsub.f32 2.0, %v62
    %v67 = vsub.f32 2.0, %v63
    %v68 = vshrl.u32 %v58, 9
    %v69 = vshrl.u32 %v59, 9
    %v70 = vor.u32 %v68, 1065353216
    %v71 = vor.u32 %v69, 1065353216
    %v74 = vsub.f32 2.0, %v70
    %v75 = vsub.f32 2.0, %v71
    %v76 = vlog2.pop %v66
    %v77 = vmul.f32 %v76, 0.6931472
    %v78 = vlog2.pop %v67
    %v79 = vmul.f32 %v78, 0.6931472
    %v80 = vmul.f32 %v77, -2.0
    %v81 = vmul.f32 %v79, -2.0
    %v82 = vrsqrt.pop %v80
    %v83 = vmul.f32 %v82, %v80
    %v84 = vmul.f32 %v83, %v82
    %v85 = vmul.f32 0.5, %v84
    %v86 = vsub.f32 1.5, %v85
    %v87 = vmul.f32 %v82, %v86
    %v88 = vmul.f32 %v80, %v87
    %vm89 = vcmp.eq.f32.partialorder %v80, inf
    %v90 = vsel %vm89, %v80, %v88
    %vm91 = vcmp.eq.f32.partialorder %v80, 0.0
    %v92 = vand.u32 %v80, 2147483648
    %v93 = vsel %vm91, %v92, %v90
    %v94 = vrsqrt.pop %v81
    %v95 = vmul.f32 %v94, %v81
    %v96 = vmul.f32 %v95, %v94
    %v97 = vmul.f32 0.5, %v96
    %v98 = vsub.f32 1.5, %v97
    %v99 = vmul.f32 %v94, %v98
    %v100 = vmul.f32 %v81, %v99
    %vm101 = vcmp.eq.f32.partialorder %v81, inf
    %v102 = vsel %vm101, %v81, %v100
    %vm103 = vcmp.eq.f32.partialorder %v81, 0.0
    %v104 = vand.u32 %v81, 2147483648
    %v105 = vsel %vm103, %v104, %v102
    %v106 = vmul.f32 %v74, 6.2831855
    %v107 = vmul.f32 %v75, 6.2831855
    %v108 = vld [vmem:[#allocation2] sm:$0xff]
    %v109 = vld [vmem:[#allocation2 + $0x8] sm:$0xff]
    %v110 = vand.u32 2147483647, %v106
    %vm111 = vcmp.le.f32.partialorder %v110, 0.7853982
    %vm112 = vcmp.lt.s32.totalorder %v106, 0
    %v113 = vand.u32 %v106, 2139095040
    %v114 = vshrl.u32 %v113, 23
    %v115 = vsub.s32 %v114, 127
    %v116 = vand.u32 2147483647, %v106
    %v117 = vand.u32 %v116, 8388607
    %v118 = vor.u32 %v117, 8388608
    %v119 = vsub.s32 0, %v118
    %v120 = vadd.s32 %v115, 1
    %vm121 = vcmp.gt.s32.totalorder %v120, 0
    %v122 = vsel %vm121, %v120, 0
    %v123 = vshrl.u32 %v122, 5
    %v124 = vand.u32 %v122, 31
    %v125 = vsub.s32 32, %v124
    %v126 = vshrl.u32 683565275, %v125
    %v127 = vshll.u32 683565275, %v124
    %v128 = vshrl.u32 2475754826, %v125
    %v129 = vor.u32 %v127, %v128
    %v130 = vshll.u32 2475754826, %v124
    %v131 = vshrl.u32 2131351028, %v125
    %v132 = vor.u32 %v130, %v131
    %v133 = vshll.u32 2131351028, %v124
    %v134 = vshrl.u32 2102212464, %v125
    %v135 = vor.u32 %v133, %v134
    %v136 = vshll.u32 2102212464, %v124
    %v137 = vshrl.u32 920167782, %v125
    %v138 = vor.u32 %v136, %v137
    %v139 = vshll.u32 920167782, %v124
    %v140 = vshrl.u32 1326507024, %v125
    %v141 = vor.u32 %v139, %v140
    %vm142 = vcmp.lt.s32.totalorder %v123, 1
    %vm143 = vcmp.lt.s32.totalorder %v123, 2
    %vm144 = vcmp.lt.s32.totalorder %v123, 3
    %vm145 = vcmp.lt.s32.totalorder %v123, 4
    %v146 = vsel %vm142, %v126, %v129
    %v147 = vsel %vm145, %v135, 2102212464
    %v148 = vsel %vm144, %v132, %v147
    %v149 = vsel %vm143, %v146, %v148
    %v150 = vsel %vm142, %v129, %v132
    %v151 = vsel %vm145, %v138, 920167782
    %v152 = vsel %vm144, %v135, %v151
    %v153 = vsel %vm143, %v150, %v152
    %v154 = vsel %vm142, %v132, %v135
    %v155 = vsel %vm145, %v141, 1326507024
    %v156 = vsel %vm144, %v138, %v155
    %v157 = vsel %vm143, %v154, %v156
    %v158 = vshll.u32 %v118, 8
    %v159 = vand.u32 %v158, 65535
    %v160 = vshrl.u32 %v158, 16
    %v161 = vand.u32 %v157, 65535
    %v162 = vshrl.u32 %v157, 16
    %v163 = vmul.u32 %v159, %v161
    %v164 = vmul.u32 %v159, %v162
    %v165 = vmul.u32 %v160, %v161
    %v166 = vmul.u32 %v160, %v162
    %v167 = vshll.u32 %v164, 16
    %v168 = vshrl.u32 %v164, 16
    %v169 = vshll.u32 %v165, 16
    %v170 = vshrl.u32 %v165, 16
    %vm171 = vc.u32 %v163, %v167
    %v172 = vsel %vm171, 1, 0
    %v173 = vadd.s32 %v163, %v167
    %v174 = vadd.s32 %v166, %v172
    %vm175 = vc.u32 %v173, %v169
    %v176 = vsel %vm175, 1, 0
    %v177 = vadd.s32 %v173, %v169
    %v178 = vadd.s32 %v174, %v176
    %v179 = vadd.s32 %v178, %v168
    %v180 = vadd.s32 %v179, %v170
    %v181 = vand.u32 %v158, 65535
    %v182 = vshrl.u32 %v158, 16
    %v183 = vand.u32 %v153, 65535
    %v184 = vshrl.u32 %v153, 16
    %v185 = vmul.u32 %v181, %v183
    %v186 = vmul.u32 %v181, %v184
    %v187 = vmul.u32 %v182, %v183
    %v188 = vmul.u32 %v182, %v184
    %v189 = vshll.u32 %v186, 16
    %v190 = vshrl.u32 %v186, 16
    %v191 = vshll.u32 %v187, 16
    %v192 = vshrl.u32 %v187, 16
    %vm193 = vc.u32 %v185, %v189
    %v194 = vsel %vm193, 1, 0
    %v195 = vadd.s32 %v185, %v189
    %v196 = vadd.s32 %v188, %v194
    %vm197 = vc.u32 %v195, %v191
    %v198 = vsel %vm197, 1, 0
    %v199 = vadd.s32 %v195, %v191
    %v200 = vadd.s32 %v196, %v198
    %v201 = vadd.s32 %v200, %v190
    %v202 = vadd.s32 %v201, %v192
    %v203 = vmul.u32 %v158, %v149
    %v204 = vadd.s32 %v180, %v199
    %vm205 = vc.u32 %v180, %v199
    %v206 = vadd.s32 %v202, 1
    %v207 = vsel %vm205, %v206, %v202
    %v208 = vadd.s32 %v203, %v207
    %v209 = vadd.s32 %v208, 536870912
    %v210 = vshrl.u32 %v209, 30
    %v211 = vshll.u32 %v210, 30
    %v212 = vsub.s32 %v208, %v211
    %vm213 = vcmp.lt.s32.totalorder %v212, 0
    %v214 = vsub.s32 0, %v212
    %v215 = vsel %vm213, %v214, %v212
    %v216 = vclz %v215
    %v217 = vsub.s32 %v216, 2
    %vm218 = vcmp.gt.s32.totalorder 0, %v217
    %v219 = vsel %vm218, 0, %v217
    %v220 = vsub.s32 32, %v219
    %v221 = vshll.u32 %v212, %v219
    %v222 = vshrl.u32 %v204, %v220
    %v223 = vor.u32 %v221, %v222
    %v224 = vsub.s32 4294967266, %v219
    %v225 = vadd.s32 %v224, 127
    %v226 = vshll.u32 %v225, 23
    %v227 = vor.u32 4788187, %v226
    %v228 = vand.u32 2147483647, %v227
    %v230 = vcvt.s32.f32 %v223
    %v231 = vmul.f32 %v230, %v228
    %v232 = vxor.u32 %v231, 2147483648
    %v233 = vsel %vm112, %v232, %v231
    %v234 = vsub.s32 4, %v210
    %v235 = vsel %vm112, %v234, %v210
    %v236 = vsel %vm111, %v106, %v233
    %v237 = vsel %vm111, 0, %v235
    %v238 = vmul.f32 %v236, %v236
    %v239 = vmul.f32 %v238, -0.001358992
    %v240 = vadd.f32 %v239, 0.041655596
    %v241 = vmul.f32 %v238, %v240
    %v242 = vadd.f32 %v241, -0.4999988
    %v243 = vmul.f32 %v238, %v242
    %v244 = vadd.f32 1.0, %v243
    %v245 = vmul.f32 %v236, %v236
    %v246 = vmul.f32 %v245, -0.00019511016
    %v247 = vadd.f32 %v246, 0.008332121
    %v248 = vmul.f32 %v245, %v247
    %v249 = vadd.f32 %v248, -0.16666654
    %v250 = vmul.f32 %v245, %v249
    %v251 = vadd.f32 %v250, 1.0
    %v252 = vmul.f32 %v251, %v236
    %vm253 = vweird.f32 %v106
    %v254 = vand.u32 %v237, 3
    %vm255 = vcmp.lt.s32.totalorder %v254, 2
    %vm256 = vcmp.eq.s32.totalorder %v254, 0
    %v257 = vxor.u32 %v252, 2147483648
    %v258 = vsel %vm256, %v244, %v257
    %vm259 = vcmp.eq.s32.totalorder %v254, 2
    %v260 = vxor.u32 %v244, 2147483648
    %v261 = vsel %vm259, %v260, %v252
    %v262 = vsel %vm255, %v258, %v261
    %v263 = vsel %vm253, nan, %v262
    %v264 = vand.u32 2147483647, %v107
    %vm265 = vcmp.le.f32.partialorder %v264, 0.7853982
    %vm266 = vcmp.lt.s32.totalorder %v107, 0
    %v267 = vand.u32 %v107, 2139095040
    %v268 = vshrl.u32 %v267, 23
    %v269 = vsub.s32 %v268, 127
    %v270 = vand.u32 2147483647, %v107
    %v271 = vand.u32 %v270, 8388607
    %v272 = vor.u32 %v271, 8388608
    %v273 = vsub.s32 0, %v272
    %v274 = vadd.s32 %v269, 1
    %vm275 = vcmp.gt.s32.totalorder %v274, 0
    %v276 = vsel %vm275, %v274, 0
    %v277 = vshrl.u32 %v276, 5
    %v278 = vand.u32 %v276, 31
    %v279 = vsub.s32 32, %v278
    %v280 = vshrl.u32 683565275, %v279
    %v281 = vshll.u32 683565275, %v278
    %v282 = vshrl.u32 2475754826, %v279
    %v283 = vor.u32 %v281, %v282
    %v284 = vshll.u32 2475754826, %v278
    %v285 = vshrl.u32 2131351028, %v279
    %v286 = vor.u32 %v284, %v285
    %v287 = vshll.u32 2131351028, %v278
    %v288 = vshrl.u32 2102212464, %v279
    %v289 = vor.u32 %v287, %v288
    %v290 = vshll.u32 2102212464, %v278
    %v291 = vshrl.u32 920167782, %v279
    %v292 = vor.u32 %v290, %v291
    %v293 = vshll.u32 920167782, %v278
    %v294 = vshrl.u32 1326507024, %v279
    %v295 = vor.u32 %v293, %v294
    %vm296 = vcmp.lt.s32.totalorder %v277, 1
    %vm297 = vcmp.lt.s32.totalorder %v277, 2
    %vm298 = vcmp.lt.s32.totalorder %v277, 3
    %vm299 = vcmp.lt.s32.totalorder %v277, 4
    %v300 = vsel %vm296, %v280, %v283
    %v301 = vsel %vm299, %v289, 2102212464
    %v302 = vsel %vm298, %v286, %v301
    %v303 = vsel %vm297, %v300, %v302
    %v304 = vsel %vm296, %v283, %v286
    %v305 = vsel %vm299, %v292, 920167782
    %v306 = vsel %vm298, %v289, %v305
    %v307 = vsel %vm297, %v304, %v306
    %v308 = vsel %vm296, %v286, %v289
    %v309 = vsel %vm299, %v295, 1326507024
    %v310 = vsel %vm298, %v292, %v309
    %v311 = vsel %vm297, %v308, %v310
    %v312 = vshll.u32 %v272, 8
    %v313 = vand.u32 %v312, 65535
    %v314 = vshrl.u32 %v312, 16
    %v315 = vand.u32 %v311, 65535
    %v316 = vshrl.u32 %v311, 16
    %v317 = vmul.u32 %v313, %v315
    %v318 = vmul.u32 %v313, %v316
    %v319 = vmul.u32 %v314, %v315
    %v320 = vmul.u32 %v314, %v316
    %v321 = vshll.u32 %v318, 16
    %v322 = vshrl.u32 %v318, 16
    %v323 = vshll.u32 %v319, 16
    %v324 = vshrl.u32 %v319, 16
    %vm325 = vc.u32 %v317, %v321
    %v326 = vsel %vm325, 1, 0
    %v327 = vadd.s32 %v317, %v321
    %v328 = vadd.s32 %v320, %v326
    %vm329 = vc.u32 %v327, %v323
    %v330 = vsel %vm329, 1, 0
    %v331 = vadd.s32 %v327, %v323
    %v332 = vadd.s32 %v328, %v330
    %v333 = vadd.s32 %v332, %v322
    %v334 = vadd.s32 %v333, %v324
    %v335 = vand.u32 %v312, 65535
    %v336 = vshrl.u32 %v312, 16
    %v337 = vand.u32 %v307, 65535
    %v338 = vshrl.u32 %v307, 16
    %v339 = vmul.u32 %v335, %v337
    %v340 = vmul.u32 %v335, %v338
    %v341 = vmul.u32 %v336, %v337
    %v342 = vmul.u32 %v336, %v338
    %v343 = vshll.u32 %v340, 16
    %v344 = vshrl.u32 %v340, 16
    %v345 = vshll.u32 %v341, 16
    %v346 = vshrl.u32 %v341, 16
    %vm347 = vc.u32 %v339, %v343
    %v348 = vsel %vm347, 1, 0
    %v349 = vadd.s32 %v339, %v343
    %v350 = vadd.s32 %v342, %v348
    %vm351 = vc.u32 %v349, %v345
    %v352 = vsel %vm351, 1, 0
    %v353 = vadd.s32 %v349, %v345
    %v354 = vadd.s32 %v350, %v352
    %v355 = vadd.s32 %v354, %v344
    %v356 = vadd.s32 %v355, %v346
    %v357 = vmul.u32 %v312, %v303
    %v358 = vadd.s32 %v334, %v353
    %vm359 = vc.u32 %v334, %v353
    %v360 = vadd.s32 %v356, 1
    %v361 = vsel %vm359, %v360, %v356
    %v362 = vadd.s32 %v357, %v361
    %v363 = vadd.s32 %v362, 536870912
    %v364 = vshrl.u32 %v363, 30
    %v365 = vshll.u32 %v364, 30
    %v366 = vsub.s32 %v362, %v365
    %vm367 = vcmp.lt.s32.totalorder %v366, 0
    %v368 = vsub.s32 0, %v366
    %v369 = vsel %vm367, %v368, %v366
    %v370 = vclz %v369
    %v371 = vsub.s32 %v370, 2
    %vm372 = vcmp.gt.s32.totalorder 0, %v371
    %v373 = vsel %vm372, 0, %v371
    %v374 = vsub.s32 32, %v373
    %v375 = vshll.u32 %v366, %v373
    %v376 = vshrl.u32 %v358, %v374
    %v377 = vor.u32 %v375, %v376
    %v378 = vsub.s32 4294967266, %v373
    %v379 = vadd.s32 %v378, 127
    %v380 = vshll.u32 %v379, 23
    %v381 = vor.u32 4788187, %v380
    %v382 = vand.u32 2147483647, %v381
    %v384 = vcvt.s32.f32 %v377
    %v385 = vmul.f32 %v384, %v382
    %v386 = vxor.u32 %v385, 2147483648
    %v387 = vsel %vm266, %v386, %v385
    %v388 = vsub.s32 4, %v364
    %v389 = vsel %vm266, %v388, %v364
    %v390 = vsel %vm265, %v107, %v387
    %v391 = vsel %vm265, 0, %v389
    %v392 = vmul.f32 %v390, %v390
    %v393 = vmul.f32 %v392, -0.001358992
    %v394 = vadd.f32 %v393, 0.041655596
    %v395 = vmul.f32 %v392, %v394
    %v396 = vadd.f32 %v395, -0.4999988
    %v397 = vmul.f32 %v392, %v396
    %v398 = vadd.f32 1.0, %v397
    %v399 = vmul.f32 %v390, %v390
    %v400 = vmul.f32 %v399, -0.00019511016
    %v401 = vadd.f32 %v400, 0.008332121
    %v402 = vmul.f32 %v399, %v401
    %v403 = vadd.f32 %v402, -0.16666654
    %v404 = vmul.f32 %v399, %v403
    %v405 = vadd.f32 %v404, 1.0
    %v406 = vmul.f32 %v405, %v390
    %vm407 = vweird.f32 %v107
    %v408 = vand.u32 %v391, 3
    %vm409 = vcmp.lt.s32.totalorder %v408, 2
    %vm410 = vcmp.eq.s32.totalorder %v408, 0
    %v411 = vxor.u32 %v406, 2147483648
    %v412 = vsel %vm410, %v398, %v411
    %vm413 = vcmp.eq.s32.totalorder %v408, 2
    %v414 = vxor.u32 %v398, 2147483648
    %v415 = vsel %vm413, %v414, %v406
    %v416 = vsel %vm409, %v412, %v415
    %v417 = vsel %vm407, nan, %v416
    %v418 = vmul.f32 %v93, %v263
    %v419 = vmul.f32 %v105, %v417
    %v420 = vmul.f32 %v418, 0.5
    %v421 = vmul.f32 %v419, 0.5
    %v422 = vadd.f32 %v420, %v108
    %v423 = vadd.f32 %v421, %v109
    %424 = vst [vmem:[#allocation8] sm:$0xff] %v422
    %425 = vst [vmem:[#allocation8 + $0x8] sm:$0xff] %v423
    // Predicated region
    $region26: #{tpu_custom_call.1} parent=1 // pred_check
      _
    $region27: #{tpu_custom_call.1} parent=1 // pred_check_branch
      %427 = sbr.rel (0) target = $region29
    $region28: #{tpu_custom_call.1} parent=1 // pred_region
      %429 = vsyncadd [#allocation4], 0
      %s431 = sshll.u32 [#allocation8], 4
      %s432 = int_to_ptr.vmem [resolvable:$true] %s431
      %s433 = sshll.u32 %s3, 4
      %s434 = int_to_ptr.hbm [resolvable:$true] %s433
      %436 = dma.vmem_to_hbm [thread:$0]  %s432, 256, %s434, [#allocation4]
    $region29: #{tpu_custom_call.1} parent=1 // pred_fallthru
      _
    // Predicated region
    $region30: #{tpu_custom_call.1} parent=1 // pred_check
      _
    $region31: #{tpu_custom_call.1} parent=1 // pred_check_branch
      %438 = sbr.rel (0) target = $region33
    $region32: #{tpu_custom_call.1} parent=1 // pred_region
      %440 = dma.done [#allocation4], 256
    $region33: #{tpu_custom_call.1} parent=1 // pred_fallthru
      _
    %441 = vsyncpa [#allocation3], 1
    %442 = vsyncpa [#allocation6], 1
    %443 = vsyncpa [#allocation4], 1

</llo_original>
